<compile_context>
chip_gen: v7x
topology: tpu7x:2x2x1
jax: 0.10.0
libtpu: 0.0.40
codegen_flags: <defaults>
</compile_context>

<pallas_src>
import jax
import jax.numpy as jnp
from jax import lax
from jax.experimental import pallas as pl
from jax.experimental.pallas import tpu as pltpu


def _round_up(n, m):
    return ((n + m - 1) // m) * m


def _max_tile_n():
    """Generation-aware spatial tile cap: 1024 on small-VMEM (v7x) chips."""
    try:
        info = pltpu.get_tpu_info()
        vmem = getattr(info, "vmem_capacity_bytes", None)
        if vmem is not None and vmem < (100 << 20):
            return 1024          # v7x-class: 64 MiB VMEM per TensorCore
        return 2048              # v5e / v6e: 128 MiB VMEM
    except Exception:
        return 1024              # safe default (within ~1% of 2048 when mem-bound)


def _choose_tile(n128, max_tile):
    """Pick a 128-multiple tile minimising padding, then per-step overhead."""
    max_tile = min(max_tile, n128)
    best = None
    for t in range(128, max_tile + 1, 128):
        padded = _round_up(n128, t)
        steps = padded // t
        cost = padded + 256 * steps      # ~0.35us/step overhead expressed in columns
        if best is None or cost < best[0] or (cost == best[0] and t > best[1]):
            best = (cost, t, padded)
    return best[1], best[2]


def _vmem_limit(footprint_bytes):
    """Scoped-VMEM limit: footprint * 1.5 + headroom, clamped to sane bounds."""
    return int(min(max(footprint_bytes * 3 // 2 + (4 << 20), 16 << 20), 100 << 20))


# --------------------------------------------------------------------------
# Phase 1a: partial energy accumulation  E_partial[s, b] = X_s @ X_s^T
# --------------------------------------------------------------------------
def _energy_kernel(x_ref, e_ref, acc_ref):
    # x_ref: (C, tn) input dtype; e_ref: (C, C) f32; acc_ref: (C, C) f32 scratch
    nt = pl.program_id(2)

    @pl.when(nt == 0)
    def _():
        acc_ref[...] = jnp.zeros_like(acc_ref)

    x = x_ref[...]
    acc_ref[...] += lax.dot_general(
        x, x, (((1,), (1,)), ((), ())),
        preferred_element_type=jnp.float32)

    @pl.when(nt == pl.num_programs(2) - 1)
    def _():
        e_ref[...] = acc_ref[...]


# --------------------------------------------------------------------------
# Phase 1b: combine partials, softmax(rowmax(E)-E), fold gamma
# --------------------------------------------------------------------------
def _softmax_gamma_kernel(gamma_ref, e_ref, attn_ref):
    # gamma_ref: (1,1) f32 SMEM; e_ref: (n_split, C, C) f32; attn_ref: (C, C)
    energy = jnp.sum(e_ref[...], axis=0)                         # (C, C) f32
    # softmax(rowmax(E) - E) == exp(rowmin(E) - E) / sum(exp(rowmin(E) - E))
    p = jnp.exp(jnp.min(energy, axis=-1, keepdims=True) - energy)
    denom = jnp.sum(p, axis=-1, keepdims=True)
    attn = p * pl.reciprocal(denom, approx=False)                 # exact divide
    attn_ref[...] = (gamma_ref[0, 0] * attn).astype(attn_ref.dtype)


# --------------------------------------------------------------------------
# Phase 2: out = attn_scaled @ X + X, streamed per spatial tile
# --------------------------------------------------------------------------
def _apply_attn_kernel(attn_ref, x_ref, o_ref):
    # attn_ref: (C, C); x_ref / o_ref: (C, tn)
    x = x_ref[...]
    out = jnp.dot(attn_ref[...], x, preferred_element_type=jnp.float32)
    o_ref[...] = (out + x.astype(jnp.float32)).astype(o_ref.dtype)


# --------------------------------------------------------------------------
# Wrapper
# --------------------------------------------------------------------------
def cam_forward(x, gamma):
    """x: (B, C, H, W); gamma: (1,) parameter. Returns (B, C, H, W)."""
    B, C, H, W = x.shape
    N = H * W
    xf = x.reshape(B, C, N)
    itemsize = jnp.dtype(xf.dtype).itemsize

    # Lane-dense spatial tiling with minimal padding (zero columns are exact
    # for X @ X^T; padded output columns are sliced off).
    n128 = _round_up(N, 128)
    tn, n_pad = _choose_tile(n128, _max_tile_n())
    if n_pad != N:
        xf = jnp.pad(xf, ((0, 0), (0, 0), (0, n_pad - N)))
    num_nt = n_pad // tn

    # Split the spatial reduction into 2 partial accumulators when B == 1 so
    # both TensorCores of a megacore (v7x) chip participate in phase 1.
    n_split = 2 if (B == 1 and num_nt >= 2 and num_nt % 2 == 0) else 1
    nl = num_nt // n_split

    gamma_s = jnp.asarray(gamma, jnp.float32).reshape(1, 1)

    # ---- Phase 1a: partial energies (n_split, B, C, C) f32 ------------------
    p1a_foot = 2 * C * tn * itemsize + 2 * C * C * 4 + C * C * 4
    energy = pl.pallas_call(
        _energy_kernel,
        out_shape=jax.ShapeDtypeStruct((n_split, B, C, C), jnp.float32),
        grid_spec=pltpu.PrefetchScalarGridSpec(
            num_scalar_prefetch=0,
            grid=(n_split, B, nl),
            in_specs=[
                pl.BlockSpec((pl.Squeezed(), C, tn),
                             lambda s, b, n: (b, 0, s * nl + n)),
            ],
            out_specs=pl.BlockSpec((pl.Squeezed(), pl.Squeezed(), C, C),
                                   lambda s, b, n: (s, b, 0, 0)),
            scratch_shapes=[pltpu.VMEM((C, C), jnp.float32)],
        ),
        compiler_params=pltpu.CompilerParams(
            dimension_semantics=("parallel", "parallel", "arbitrary"),
            vmem_limit_bytes=_vmem_limit(p1a_foot)),
        cost_estimate=pl.CostEstimate(
            flops=2 * B * C * C * n_pad,
            transcendentals=0,
            bytes_accessed=B * C * n_pad * itemsize + n_split * B * C * C * 4),
    )(xf)

    # ---- Phase 1b: softmax + gamma fold -> attention map (B, C, C) ----------
    p1b_foot = 2 * n_split * C * C * 4 + 2 * C * C * itemsize
    attn = pl.pallas_call(
        _softmax_gamma_kernel,
        out_shape=jax.ShapeDtypeStruct((B, C, C), xf.dtype),
        grid_spec=pltpu.PrefetchScalarGridSpec(
            num_scalar_prefetch=0,
            grid=(B,),
            in_specs=[
                pl.BlockSpec(memory_space=pltpu.MemorySpace.SMEM),   # gamma
                pl.BlockSpec((n_split, pl.Squeezed(), C, C),
                             lambda b: (0, b, 0, 0)),                # partial E
            ],
            out_specs=pl.BlockSpec((pl.Squeezed(), C, C), lambda b: (b, 0, 0)),
        ),
        compiler_params=pltpu.CompilerParams(
            dimension_semantics=("parallel",),
            vmem_limit_bytes=_vmem_limit(p1b_foot)),
        cost_estimate=pl.CostEstimate(
            flops=4 * B * n_split * C * C,
            transcendentals=B * C * C,
            bytes_accessed=n_split * B * C * C * 4 + B * C * C * itemsize),
    )(gamma_s, energy)

    # ---- Phase 2: out = attn_scaled @ X + X ---------------------------------
    p2_foot = 2 * C * C * itemsize + 4 * C * tn * itemsize
    out = pl.pallas_call(
        _apply_attn_kernel,
        out_shape=jax.ShapeDtypeStruct((B, C, n_pad), xf.dtype),
        grid_spec=pltpu.PrefetchScalarGridSpec(
            num_scalar_prefetch=0,
            grid=(B, num_nt),
            in_specs=[
                pl.BlockSpec((pl.Squeezed(), C, C), lambda b, n: (b, 0, 0)),
                pl.BlockSpec((pl.Squeezed(), C, tn), lambda b, n: (b, 0, n)),
            ],
            out_specs=pl.BlockSpec((pl.Squeezed(), C, tn), lambda b, n: (b, 0, n)),
        ),
        compiler_params=pltpu.CompilerParams(
            dimension_semantics=("parallel", "parallel"),
            vmem_limit_bytes=_vmem_limit(p2_foot)),
        cost_estimate=pl.CostEstimate(
            flops=2 * B * C * C * n_pad + B * C * n_pad,
            transcendentals=0,
            bytes_accessed=2 * B * C * n_pad * itemsize + B * C * C * itemsize),
    )(attn, xf)

    if n_pad != N:
        out = out[:, :, :N]
    return out.reshape(B, C, H, W)


def cam_reference(x, gamma):
    """Pure-JAX reference mirroring the PyTorch forward exactly."""
    B, C, H, W = x.shape
    q = x.reshape(B, C, -1)
    energy = jnp.einsum('bcn,bdn->bcd', q, q)
    energy_new = jnp.max(energy, axis=-1, keepdims=True) - energy
    attn = jax.nn.softmax(energy_new, axis=-1)
    out = jnp.einsum('bcd,bdn->bcn', attn, q).reshape(B, C, H, W)
    return gamma[0] * out + x


if __name__ == "__main__":
    key = jax.random.PRNGKey(0)
    B, C, H, W = 2, 4, 16, 16
    x = jax.random.normal(key, (B, C, H, W), dtype=jnp.float32)

    # Parameter from __init__: gamma = zeros(1)  (deterministic, no checkpoint)
    gamma0 = jnp.zeros((1,), dtype=jnp.float32)
    y0 = jax.block_until_ready(cam_forward(x, gamma0))
    y0_ref = cam_reference(x, gamma0)
    assert y0.shape == (B, C, H, W)
    assert jnp.allclose(y0, y0_ref, atol=1e-5, rtol=1e-5), "mismatch (gamma=0)"

    # Exercise the attention path (nonzero gamma). Exact softmax reciprocal
    # lets us tighten the tolerance vs. the previous 1e-2.
    gamma1 = jnp.full((1,), 0.5, dtype=jnp.float32)
    y1 = jax.block_until_ready(cam_forward(x, gamma1))
    y1_ref = cam_reference(x, gamma1)
    assert jnp.allclose(y1, y1_ref, atol=5e-3, rtol=5e-3), "mismatch (gamma=0.5)"

    print("KERNEL_OK")
</pallas_src>

<mosaic_0001>
module attributes {stable_mosaic.version = 11 : i64} {
  func.func @_energy_kernel(%arg0: i32, %arg1: i32, %arg2: i32, %arg3: memref<1x4x256xf32, #tpu.memory_space<vmem>>, %arg4: memref<1x1x4x4xf32, #tpu.memory_space<vmem>>, %arg5: memref<4x4xf32, #tpu.memory_space<vmem>>) attributes {dimension_semantics = [#tpu.dimension_semantics<parallel>, #tpu.dimension_semantics<parallel>, #tpu.dimension_semantics<arbitrary>], iteration_bounds = array<i64: 1, 2, 1>, scalar_prefetch = 0 : i64, scratch_operands = 1 : i64, tpu.core_type = #tpu.core_type<tc>, window_params = [{transform_indices = @transform_0, window_bounds = array<i64: 1, 4, 256>}, {transform_indices = @transform_1, window_bounds = array<i64: 1, 1, 4, 4>}]} {
    %c0_i32 = arith.constant 0 : i32
    %0 = arith.cmpi eq, %arg2, %c0_i32 : i32
    %1 = arith.extui %0 : i1 to i32
    %c0_i32_0 = arith.constant 0 : i32
    %2 = arith.cmpi ne, %1, %c0_i32_0 : i32
    scf.if %2 {
      %cst_9 = arith.constant 0.000000e+00 : f32
      %12 = vector.broadcast %cst_9 : f32 to vector<4x4xf32>
      %c0_10 = arith.constant 0 : index
      %c0_11 = arith.constant 0 : index
      %13 = vector.load %arg5[%c0_10, %c0_11] : memref<4x4xf32, #tpu.memory_space<vmem>>, vector<4x4xf32>
      tpu.vector_store %arg5[%c0_10, %c0_11], %12 {strides = array<i32>} : memref<4x4xf32, #tpu.memory_space<vmem>>, vector<4x4xf32>,
    } else {
    }
    %c0 = arith.constant 0 : index
    %c0_1 = arith.constant 0 : index
    %c0_2 = arith.constant 0 : index
    %3 = vector.load %arg3[%c0, %c0_1, %c0_2] : memref<1x4x256xf32, #tpu.memory_space<vmem>>, vector<1x4x256xf32>
    %4 = vector.shape_cast %3 : vector<1x4x256xf32> to vector<4x256xf32>
    %c0_3 = arith.constant 0 : index
    %c0_4 = arith.constant 0 : index
    %5 = vector.load %arg5[%c0_3, %c0_4] : memref<4x4xf32, #tpu.memory_space<vmem>>, vector<4x4xf32>
    %cst = arith.constant dense<0.000000e+00> : vector<4x4xf32>
    %6 = tpu.matmul %4, %4, %cst {dimension_numbers = #tpu.dot_dimension_numbers<[1], [1], [0], [0], [0, 0, 1, 0], [], []>} : vector<4x256xf32>, vector<4x256xf32>, vector<4x4xf32> -> vector<4x4xf32>
    %7 = arith.addf %5, %6 : vector<4x4xf32>
    %c0_5 = arith.constant 0 : index
    %c0_6 = arith.constant 0 : index
    %8 = vector.load %arg5[%c0_5, %c0_6] : memref<4x4xf32, #tpu.memory_space<vmem>>, vector<4x4xf32>
    tpu.vector_store %arg5[%c0_5, %c0_6], %7 {strides = array<i32>} : memref<4x4xf32, #tpu.memory_space<vmem>>, vector<4x4xf32>,
    %c0_i32_7 = arith.constant 0 : i32
    %9 = arith.cmpi eq, %arg2, %c0_i32_7 : i32
    %10 = arith.extui %9 : i1 to i32
    %c0_i32_8 = arith.constant 0 : i32
    %11 = arith.cmpi ne, %10, %c0_i32_8 : i32
    scf.if %11 {
      %c0_9 = arith.constant 0 : index
      %c0_10 = arith.constant 0 : index
      %12 = vector.load %arg5[%c0_9, %c0_10] : memref<4x4xf32, #tpu.memory_space<vmem>>, vector<4x4xf32>
      %c0_11 = arith.constant 0 : index
      %c0_12 = arith.constant 0 : index
      %c0_13 = arith.constant 0 : index
      %c0_14 = arith.constant 0 : index
      %13 = vector.load %arg4[%c0_11, %c0_12, %c0_13, %c0_14] : memref<1x1x4x4xf32, #tpu.memory_space<vmem>>, vector<1x1x4x4xf32>
      %14 = vector.shape_cast %13 : vector<1x1x4x4xf32> to vector<4x4xf32>
      %15 = vector.shape_cast %12 : vector<4x4xf32> to vector<1x1x4x4xf32>
      tpu.vector_store %arg4[%c0_11, %c0_12, %c0_13, %c0_14], %15 {strides = array<i32>} : memref<1x1x4x4xf32, #tpu.memory_space<vmem>>, vector<1x1x4x4xf32>,
    } else {
    }
    return
  }
  func.func @transform_0(%arg0: i32, %arg1: i32, %arg2: i32) -> (i32, i32, i32) {
    %c1_i32 = arith.constant 1 : i32
    %0 = arith.muli %arg0, %c1_i32 : i32
    %1 = arith.addi %0, %arg2 : i32
    %c0_i32 = arith.constant 0 : i32
    %c0_i32_0 = arith.constant 0 : i32
    return %arg1, %c0_i32, %1 : i32, i32, i32
  }
  func.func @transform_1(%arg0: i32, %arg1: i32, %arg2: i32) -> (i32, i32, i32, i32) {
    %c0_i32 = arith.constant 0 : i32
    %c0_i32_0 = arith.constant 0 : i32
    %c0_i32_1 = arith.constant 0 : i32
    return %arg0, %arg1, %c0_i32, %c0_i32_0 : i32, i32, i32, i32
  }
}

</mosaic_0001>

<llo_original>
// kernel: tpu_custom_call.1
$region0: #{tpu_custom_call.1}
  #allocation0 [shape = 'u32[]', space=smem, size = 0x4, offset = 0x4, fixed_abs, tag = 'smem constant byte address 0x4 - core index']
  #allocation1 [shape = 'u32[144,128]{1,0:T(1,128)}', space=vmem, size = 0x12000, scoped, tag = 'internal scratch']
  #allocation2 [shape = 'f32[4,4]{1,0:T(4,128)}', space=vmem, size = 0x800, scoped, tag = 'scratch operand']
  %s0 = inlined_call_operand.hbm [shape: f32[2,4,256], index: 0, kind: input, shape index: {}]
  %s1 = inlined_call_operand.hbm [shape: f32[1,2,4,4], index: 1, kind: output, shape index: {}]
  %s2 = sld [smem:[#allocation0]]
  $region49: #{tpu_custom_call.1} parent=0
    _
  %s4 = ssub.s32 1, %s2
  %s5 = scalar_select 0, %s4, %s2
  $region1: #{tpu_custom_call.1} parent=0
    #allocation3 [shape = 'u8[8192]{0}', space=vmem, size = 0x2000, scoped, tag = 'input window, operand 0']
    #allocation4 [shape = 's32[2]{0}', space=sflag, size = 0x8, scoped, tag = 'scoped memory for tpu_custom_call.1']
    #allocation5 [shape = 's32[2]{0}', space=sflag, size = 0x8, scoped, tag = 'scoped memory for tpu_custom_call.1']
    #allocation6 [shape = 'u8[4096]{0}', space=vmem, size = 0x1000, scoped, tag = 'output window, operand 0']
    %6 = vsyncpa [#allocation4], 0
    %s7 = scalar_lea.sflag [#allocation4], 1
    %8 = vsyncpa %s7, 0
    %9 = vsyncpa [#allocation5], 0
    %s10 = scalar_lea.sflag [#allocation5], 1
    %11 = vsyncpa %s10, 0
    loop: start=0, step=1, limit=4
    $region2: #{tpu_custom_call.1} parent=1 // loop_pre_header
      _
    $region3: #{tpu_custom_call.1} parent=1 // loop_header
      %s13 = sphi 0, %s17
      %p14 = scmp.ge.s32.totalorder %s13, 4
      %s20 = sphi 0, %s39
      %s21 = sphi 0, %s35
      %s22 = sphi 0, %s31
      %s23 = sphi 0, %s20
      %s24 = sphi 0, %s21
      %s25 = sphi 0, %s22
      %s26 = sphi 0, %s23
      %s27 = sphi 0, %s24
      %s28 = sphi 0, %s25
      %s46 = sphi 0, %s48
      %s49 = sphi 0, %s46
      %s50 = sphi 0, %s49
      %s66 = sphi 0, %s50
      %s74 = sphi 0, %s76
      %s77 = sphi 0, %s74
      %s78 = sphi 0, %s77
      %s94 = sphi 0, %s78
    $region4: #{tpu_custom_call.1} parent=1 // loop_header_branch
      %16 = sbr.rel (%p14) target = $region8
    $region5: #{tpu_custom_call.1} parent=1 // loop_body
      %s18 = ssub.s32 %s13, 1
      %s19 = ssub.s32 %s13, 2
      %s29 = sadd.s32 1, %s22
      %p30 = scmp.ge.s32.totalorder %s29, 1
      %s31 = scalar_select %p30, 0, %s29
      %s32 = sadd.s32 1, %s21
      %s33 = scalar_select %p30, %s32, %s21
      %p34 = scmp.ge.s32.totalorder %s33, 2
      %s35 = scalar_select %p34, 0, %s33
      %s36 = sadd.s32 1, %s20
      %s37 = scalar_select %p34, %s36, %s20
      %p38 = scmp.ge.s32.totalorder %s37, 1
      %s39 = scalar_select %p38, 0, %s37
      %s40 = sadd.s32 %s20, %s22
      %s41 = sadd.s32 %s39, %s31
      %s42 = ssub.s32 %s21, %s35
      %s43 = ssub.s32 %s40, %s41
      %s44 = sor.u32 %s42, %s43
      %p45 = scmp.eq.s32.totalorder %s44, 0
      %s47 = sadd.s32 %s46, 1
      %s48 = scalar_select %p45, %s46, %s47
      %p51 = pneg %p45
      %p52 = scmp.eq.s32.totalorder %s13, 1
      %p53 = por %p51, %p52
      %p54 = scmp.ne.s32.totalorder %s46, %s49
      %p55 = scmp.eq.s32.totalorder %s13, 0
      %p56 = por %p54, %p55
      %p57 = scmp.ne.s32.totalorder %s46, %s49
      %p58 = scmp.eq.s32.totalorder %s18, 1
      %p59 = por %p57, %p58
      %p60 = scmp.ne.s32.totalorder %s49, %s50
      %p61 = scmp.eq.s32.totalorder %s18, 0
      %p62 = por %p60, %p61
      %p63 = scmp.ne.s32.totalorder %s49, %s50
      %p64 = scmp.eq.s32.totalorder %s19, 1
      %p65 = por %p63, %p64
      %p67 = scmp.ne.s32.totalorder %s50, %s66
      %p68 = scmp.eq.s32.totalorder %s19, 0
      %p69 = por %p67, %p68
      %s70 = ssub.s32 %s20, %s39
      %s71 = ssub.s32 %s21, %s35
      %s72 = sor.u32 %s70, %s71
      %p73 = scmp.eq.s32.totalorder %s72, 0
      %s75 = sadd.s32 %s74, 1
      %s76 = scalar_select %p73, %s74, %s75
      %p79 = pneg %p73
      %p80 = scmp.eq.s32.totalorder %s13, 1
      %p81 = por %p79, %p80
      %p82 = scmp.ne.s32.totalorder %s74, %s77
      %p83 = scmp.eq.s32.totalorder %s13, 0
      %p84 = por %p82, %p83
      %p85 = scmp.ne.s32.totalorder %s74, %s77
      %p86 = scmp.eq.s32.totalorder %s18, 1
      %p87 = por %p85, %p86
      %p88 = scmp.ne.s32.totalorder %s77, %s78
      %p89 = scmp.eq.s32.totalorder %s18, 0
      %p90 = por %p88, %p89
      %p91 = scmp.ne.s32.totalorder %s77, %s78
      %p92 = scmp.eq.s32.totalorder %s19, 1
      %p93 = por %p91, %p92
      %p95 = scmp.ne.s32.totalorder %s78, %s94
      %p96 = scmp.eq.s32.totalorder %s19, 0
      %p97 = por %p95, %p96
      %p98 = scmp.le.s32.totalorder 1, %s13
      %p99 = scmp.lt.s32.totalorder %s13, 3
      %p100 = pnand %p98, %p99
      %p101 = pneg %p100
      // Predicated region
      $region9: #{tpu_custom_call.1} parent=5 // pred_check
        _
      $region10: #{tpu_custom_call.1} parent=5 // pred_check_branch
        %103 = sbr.rel (%p100) target = $region12
      $region11: #{tpu_custom_call.1} parent=5 // pred_region
        %s104 = ssub.s32 %s13, 1
      $region12: #{tpu_custom_call.1} parent=5 // pred_fallthru
        _
      %p105 = scmp.lt.s32.totalorder %s13, 2
      // Predicated region
      $region13: #{tpu_custom_call.1} parent=5 // pred_check
        %p106 = pneg %p105
      $region14: #{tpu_custom_call.1} parent=5 // pred_check_branch
        %108 = sbr.rel (%p106) target = $region16
      $region15: #{tpu_custom_call.1} parent=5 // pred_region
        // Predicated region
        $region17: #{tpu_custom_call.1} parent=15 // pred_check
          %p109 = pneg %p56
        $region18: #{tpu_custom_call.1} parent=15 // pred_check_branch
          %111 = sbr.rel (%p109) target = $region20
        $region19: #{tpu_custom_call.1} parent=15 // pred_region
          %s112 = sand.u32 %s46, 1
          %s113 = scalar_lea.sflag [#allocation4], %s112
          %s114 = sand.u32 %s46, 1
          %s115 = smul.addr %s114, 8
          %s116 = scalar_lea.vmem [#allocation3], %s115
          %s117 = sadd.s32 %s20, %s22
          %s118 = smul.u32 2, %s117
          %s120 = ssub.s32 128, 128
          %121 = vsyncadd %s113, %s120
          %s122 = smul.addr %s21, 2
          %s123 = sadd.s32 %s118, %s122
          %s124 = smul.addr %s123, 64
          %s125 = scalar_lea.hbm %s0, %s124
          %s127 = sshll.u32 %s116, 4
          %s128 = int_to_ptr.vmem [resolvable:$true] %s127
          %130 = dma.hbm_to_vmem [thread:$0]  %s125, 128, %s128, %s113
        $region20: #{tpu_custom_call.1} parent=15 // pred_fallthru
          _
      $region16: #{tpu_custom_call.1} parent=5 // pred_fallthru
        _
      %p131 = scmp.le.s32.totalorder 1, %s13
      %p132 = scmp.lt.s32.totalorder %s13, 3
      %p133 = pnand %p131, %p132
      %p134 = pneg %p133
      // Predicated region
      $region21: #{tpu_custom_call.1} parent=5 // pred_check
        _
      $region22: #{tpu_custom_call.1} parent=5 // pred_check_branch
        %136 = sbr.rel (%p133) target = $region24
      $region23: #{tpu_custom_call.1} parent=5 // pred_region
        %s137 = ssub.s32 %s13, 1
        %s138 = sand.u32 %s49, 1
        %s139 = scalar_lea.sflag [#allocation4], %s138
        %s140 = sand.u32 %s49, 1
        %s141 = smul.addr %s140, 8
        %s142 = scalar_lea.vmem [#allocation3], %s141
        // Predicated region
        $region25: #{tpu_custom_call.1} parent=23 // pred_check
          %p143 = pneg %p62
        $region26: #{tpu_custom_call.1} parent=23 // pred_check_branch
          %145 = sbr.rel (%p143) target = $region28
        $region27: #{tpu_custom_call.1} parent=23 // pred_region
          %146 = dma.done %s139, 128
        $region28: #{tpu_custom_call.1} parent=23 // pred_fallthru
          _
        %s147 = sand.u32 %s49, 1
        %s148 = scalar_lea.sflag [#allocation4], %s147
        %s149 = sand.u32 %s49, 1
        %s150 = smul.addr %s149, 8
        %s151 = scalar_lea.vmem [#allocation3], %s150
        %p152 = pneg %p62
        %p153 = pneg %p59
        %p154 = pneg %p90
        %p155 = pneg %p87
        %s156 = sand.u32 %s77, 1
        %s157 = scalar_lea.sflag [#allocation5], %s156
        %s158 = sand.u32 %s77, 1
        %s159 = smul.addr %s158, 4
        %s160 = scalar_lea.vmem [#allocation6], %s159
        %s161 = sadd.s32 %s23, %s25
        %s162 = smul.u32 2, %s161
        %p163 = scmp.eq.s32.totalorder %s25, 0
        // Predicated region
        $region29: #{tpu_custom_call.1} parent=23 // pred_check
          %p164 = pneg %p163
        $region30: #{tpu_custom_call.1} parent=23 // pred_check_branch
          %166 = sbr.rel (%p164) target = $region32
        $region31: #{tpu_custom_call.1} parent=23 // pred_region
          %vm167 = vcmask 27648
          %168 = vst.msk [vmem:[#allocation2] sm:$0xf] %vm167, 0.0
        $region32: #{tpu_custom_call.1} parent=23 // pred_fallthru
          _
        %v169 = vld [vmem:[%s142] sm:$0xff]
        %v170 = vld [vmem:[#allocation2] sm:$0xf]
        %v172 = vcombine.high %v169, %v169
        %174 = vmatprep.subr.mxu0 %v172
        %175 = vmatpush1.xpose.msra.mxu0 %v169
        %176 = vmatprep.subr.mxu0 0.0
        %177 = vmatpush1.xpose.msra.mxu0 0.0
        %178 = vmatprep.subr.mxu0 0.0
        %179 = vmatpush1.xpose.msra.mxu0 0.0
        %180 = vmatprep.subr.mxu0 0.0
        %181 = vmatpush1.xpose.msra.mxu0 0.0
        %182 = vmatprep.subr.mxu0 0.0
        %183 = vmatpush1.xpose.msra.mxu0 0.0
        %184 = vmatprep.subr.mxu0 0.0
        %185 = vmatpush1.xpose.msra.mxu0 0.0
        %186 = vmatprep.subr.mxu0 0.0
        %187 = vmatpush1.xpose.msra.mxu0 0.0
        %188 = vmatprep.subr.mxu0 0.0
        %189 = vmatpush1.xpose.msra.mxu0 0.0
        %190 = vmatprep.subr.mxu0 0.0
        %191 = vmatpush1.xpose.msra.mxu0 0.0
        %192 = vmatprep.subr.mxu0 0.0
        %193 = vmatpush1.xpose.msra.mxu0 0.0
        %194 = vmatprep.subr.mxu0 0.0
        %195 = vmatpush1.xpose.msra.mxu0 0.0
        %196 = vmatprep.subr.mxu0 0.0
        %197 = vmatpush1.xpose.msra.mxu0 0.0
        %198 = vmatprep.subr.mxu0 0.0
        %199 = vmatpush1.xpose.msra.mxu0 0.0
        %200 = vmatprep.subr.mxu0 0.0
        %201 = vmatpush1.xpose.msra.mxu0 0.0
        %202 = vmatprep.subr.mxu0 0.0
        %203 = vmatpush1.xpose.msra.mxu0 0.0
        %204 = vmatprep.subr.mxu0 0.0
        %205 = vmatpush1.xpose.msra.mxu0 0.0
        %206 = vmatprep.subr.mxu0 0.0
        %207 = vmatpush1.xpose.msra.mxu0 0.0
        %208 = vmatprep.subr.mxu0 0.0
        %209 = vmatpush1.xpose.msra.mxu0 0.0
        %210 = vmatprep.subr.mxu0 0.0
        %211 = vmatpush1.xpose.msra.mxu0 0.0
        %212 = vmatprep.subr.mxu0 0.0
        %213 = vmatpush1.xpose.msra.mxu0 0.0
        %214 = vmatprep.subr.mxu0 0.0
        %215 = vmatpush1.xpose.msra.mxu0 0.0
        %216 = vmatprep.subr.mxu0 0.0
        %217 = vmatpush1.xpose.msra.mxu0 0.0
        %218 = vmatprep.subr.mxu0 0.0
        %219 = vmatpush1.xpose.msra.mxu0 0.0
        %220 = vmatprep.subr.mxu0 0.0
        %221 = vmatpush1.xpose.msra.mxu0 0.0
        %222 = vmatprep.subr.mxu0 0.0
        %223 = vmatpush1.xpose.msra.mxu0 0.0
        %224 = vmatprep.subr.mxu0 0.0
        %225 = vmatpush1.xpose.msra.mxu0 0.0
        %226 = vmatprep.subr.mxu0 0.0
        %227 = vmatpush1.xpose.msra.mxu0 0.0
        %228 = vmatprep.subr.mxu0 0.0
        %229 = vmatpush1.xpose.msra.mxu0 0.0
        %230 = vmatprep.subr.mxu0 0.0
        %231 = vmatpush1.xpose.msra.mxu0 0.0
        %232 = vmatprep.subr.mxu0 0.0
        %233 = vmatpush1.xpose.msra.mxu0 0.0
        %234 = vmatprep.subr.mxu0 0.0
        %235 = vmatpush1.xpose.msra.mxu0 0.0
        %236 = vmatprep.subr.mxu0 0.0
        %237 = vmatpush1.xpose.msra.mxu0 0.0
        %238 = vmatprep.mubr.f32.mxu0 %v172
        %239 = vmatmul.mubr.f32.gmra.mrb[0].mxu0 %v169
        %v240 = vpop.f32.mrb[0].mxu0
        %v241 = vadd.f32 0.0, %v240
        %v242 = vpop.f32.mrb[0].mxu0
        %243 = vdwg.mxu0
        %v244 = vadd.f32 %v170, %v241
        %vm245 = vcmask 27648
        %246 = vst.msk [vmem:[#allocation2] sm:$0xf] %vm245, %v244
        // Predicated region
        $region33: #{tpu_custom_call.1} parent=23 // pred_check
          %p247 = pneg %p163
        $region34: #{tpu_custom_call.1} parent=23 // pred_check_branch
          %249 = sbr.rel (%p247) target = $region36
        $region35: #{tpu_custom_call.1} parent=23 // pred_region
          %v250 = vld [vmem:[#allocation2] sm:$0xf]
          %251 = vst.msk [vmem:[%s160] sm:$0xf] %vm245, %v250
        $region36: #{tpu_custom_call.1} parent=23 // pred_fallthru
          _
        %s252 = sand.u32 %s77, 1
        %s253 = scalar_lea.sflag [#allocation5], %s252
        %s254 = sand.u32 %s77, 1
        %s255 = smul.addr %s254, 4
        %s256 = scalar_lea.vmem [#allocation6], %s255
        // Predicated region
        $region37: #{tpu_custom_call.1} parent=23 // pred_check
          %p257 = pneg %p87
        $region38: #{tpu_custom_call.1} parent=23 // pred_check_branch
          %259 = sbr.rel (%p257) target = $region40
        $region39: #{tpu_custom_call.1} parent=23 // pred_region
          %s261 = ssub.s32 64, 64
          %262 = vsyncadd %s253, %s261
          %s263 = smul.addr %s23, 2
          %s264 = sadd.s32 %s24, %s263
          %s265 = smul.addr %s264, 64
          %s266 = scalar_lea.hbm %s1, %s265
          %s268 = sshll.u32 %s256, 4
          %s269 = int_to_ptr.vmem [resolvable:$true] %s268
          %271 = dma.vmem_to_hbm [thread:$0]  %s269, 64, %s266, %s253
        $region40: #{tpu_custom_call.1} parent=23 // pred_fallthru
          _
      $region24: #{tpu_custom_call.1} parent=5 // pred_fallthru
        _
      %p272 = scmp.le.s32.totalorder 2, %s13
      // Predicated region
      $region41: #{tpu_custom_call.1} parent=5 // pred_check
        %p273 = pneg %p272
      $region42: #{tpu_custom_call.1} parent=5 // pred_check_branch
        %275 = sbr.rel (%p273) target = $region44
      $region43: #{tpu_custom_call.1} parent=5 // pred_region
        %s276 = ssub.s32 %s13, 2
        // Predicated region
        $region45: #{tpu_custom_call.1} parent=43 // pred_check
          %p277 = pneg %p93
        $region46: #{tpu_custom_call.1} parent=43 // pred_check_branch
          %279 = sbr.rel (%p277) target = $region48
        $region47: #{tpu_custom_call.1} parent=43 // pred_region
          %s280 = sand.u32 %s78, 1
          %s281 = scalar_lea.sflag [#allocation5], %s280
          %s282 = sand.u32 %s78, 1
          %s283 = smul.addr %s282, 4
          %s284 = scalar_lea.vmem [#allocation6], %s283
          %285 = dma.done %s281, 64
        $region48: #{tpu_custom_call.1} parent=43 // pred_fallthru
          _
      $region44: #{tpu_custom_call.1} parent=5 // pred_fallthru
        _
    $region6: #{tpu_custom_call.1} parent=1 // loop_footer
      %s17 = sadd.s32 1, %s13
    $region7: #{tpu_custom_call.1} parent=1 // loop_footer_branch
      %12 = sbr.rel target = $region3
    $region8: #{tpu_custom_call.1} parent=1 // loop_exit
      _
    %286 = vsyncpa [#allocation4], 1
    %s287 = scalar_lea.sflag [#allocation4], 1
    %288 = vsyncpa %s287, 1
    %289 = vsyncpa [#allocation5], 1
    %s290 = scalar_lea.sflag [#allocation5], 1
    %291 = vsyncpa %s290, 1

</llo_original>
